<compile_context>
chip_gen: v6e
topology: v6e:2x2x1
jax: 0.10.0
libtpu: 0.0.40
codegen_flags: <defaults>
</compile_context>

<pallas_src>
import functools

import jax
import jax.numpy as jnp
from jax.experimental import pallas as pl
from jax.experimental.pallas import tpu as pltpu


# --------------------------- hardware heuristics --------------------------- #
def _device_kind():
    try:
        return jax.devices()[0].device_kind.lower()
    except Exception:
        return ""


def _num_tensorcores():
    """TensorCores sharing the grid via dimension_semantics=('parallel',)."""
    try:
        info = pltpu.get_tpu_info()
        for attr in ("num_cores", "core_count", "num_tensorcores"):
            v = getattr(info, attr, None)
            if isinstance(v, int) and 0 < v <= 16:
                return v
    except Exception:
        pass
    kind = _device_kind()
    # v7x has 2 TCs/chip; v4/v5p megacore also expose 2 cores per device.
    # The single-core inference chips (v5e/v6e) expose 1.
    if any(t in kind for t in ("v7", "tpu7", "v4", "v5p")):
        return 2
    return 1


def _lane_target():
    """Output lane width: fill the 256-wide MXU on v6e/v7x, 128 elsewhere."""
    kind = _device_kind()
    if any(t in kind for t in ("v6", "v7", "tpu7")):
        return 256
    return 128


def _vmem_budget_bytes():
    limit = 32 * 1024 * 1024  # single cap valid on v5e / v6e / v7x
    try:
        cap = pltpu.get_tpu_info().vmem_capacity_bytes
        if isinstance(cap, int) and cap > 0:
            limit = min(limit, cap // 2)
    except Exception:
        pass
    return limit


# ----------------------------- Pallas kernel ------------------------------ #
def conv_bn_act_kernel(a_ref, w_ref, shift_ref, o_ref):
    # a_ref:     (TR, G*Kp)    bf16 packed im2col rows (G spatial positions/row)
    # w_ref:     (G*Kp, G*Cp)  bf16 block-diagonal weights (BN scale pre-folded)
    # shift_ref: (1, G*Cp)     f32 folded BN shift (tiled G times)
    # o_ref:     (TR, G*Cp)    fully lane-dense stores (128/256 wide)
    acc = jnp.dot(a_ref[...], w_ref[...], preferred_element_type=jnp.float32)
    o_ref[...] = jnp.maximum(acc + shift_ref[...], 0.0).astype(o_ref.dtype)


# ------------------------------ host glue --------------------------------- #
def _im2col_nhwc(x_nhwc, k, stride, pad):
    """Extract kxk patches with (kh, kw, cin) feature ordering.

    Cast to bf16 *before* the k*k-way concat so that, if XLA declines to fuse
    this producer chain into the pallas_call operand, the materialized
    intermediate is already half-width."""
    x = jnp.pad(x_nhwc.astype(jnp.bfloat16),
                ((0, 0), (pad, pad), (pad, pad), (0, 0)))
    _, Hp, Wp, _ = x.shape
    Ho = (Hp - k) // stride + 1
    Wo = (Wp - k) // stride + 1
    cols = []
    for di in range(k):
        for dj in range(k):
            cols.append(
                x[:, di:di + stride * Ho:stride, dj:dj + stride * Wo:stride, :]
            )
    patches = jnp.concatenate(cols, axis=-1)  # (N, Ho, Wo, k*k*C) bf16
    return patches, Ho, Wo


def _pick_packing(cout, lane_target):
    """Pick G (spatial positions packed per kernel row) and padded channel
    count Cp so that G*Cp == lane_target (lane-dense stores), or Cp a multiple
    of 128 when cout is already wide.  No divisibility assertion: Cout values
    like 48/96 get zero-padded channels that are sliced off afterwards."""
    if cout >= lane_target:
        return 1, pl.cdiv(cout, 128) * 128
    cout_pad = cout
    while lane_target % cout_pad != 0:
        cout_pad += 1                 # lane_target is a power of two -> next pow2
    return lane_target // cout_pad, cout_pad


def conv2d_bn_act_nhwc(x_nhwc, conv_w, bn_gamma, bn_beta, bn_mean, bn_var,
                       *, stride=2, eps=1e-5, out_dtype=jnp.bfloat16):
    """Fused Conv2d(bias=False, pad=k//2) + eval-BatchNorm2d + ReLU.
    NHWC in / NHWC out.  Chain this directly across the Residual_LiteBlock
    stack (NHWC end-to-end) and convert layout once at the model boundary."""
    N, H, W, Cin = x_nhwc.shape
    Cout, _, Kh, Kw = conv_w.shape
    pad = Kh // 2

    lane_target = _lane_target()
    G, Cp = _pick_packing(Cout, lane_target)

    # im2col (glue).  allow_input_fusion below asks XLA to fuse this producer
    # chain into the pallas_call operand read (avoid the ~(k*k/stride^2)x
    # inflated patch matrix round-tripping HBM).
    patches, Ho, Wo = _im2col_nhwc(x_nhwc, Kh, stride, pad)
    M = N * Ho * Wo
    Kdim = Kh * Kw * Cin
    Kp = pl.cdiv(Kdim, 128) * 128     # e.g. 196 -> 256 (full MXU K passes)

    out_bytes = jnp.dtype(out_dtype).itemsize
    row_quant = 8 * G                 # TR must stay a multiple of 8 sublanes

    def vmem_bytes(tm_):
        tr = tm_ // G
        a = 2 * tr * G * Kp * 2                 # A stream, double-buffered bf16
        w = 2 * G * Kp * G * Cp * 2             # W (constant index, still 2 bufs)
        s = 2 * 1 * G * Cp * 4                  # shift
        o = 2 * tr * G * Cp * out_bytes         # output
        return a + w + s + o

    # Row tile: target ~8192 spatial rows (~4 MiB bf16 A block at Kp=256) so the
    # ~0.35 us/step grid overhead is negligible; shrink only for the VMEM budget
    # and to keep enough grid steps for pipelining / both TensorCores.
    budget = (_vmem_budget_bytes() * 3) // 4
    tm = max(row_quant, (8192 // row_quant) * row_quant)
    while tm > row_quant and vmem_bytes(tm) > budget:
        tm //= 2
    min_steps = max(3, 3 * _num_tensorcores())   # >=3 (1 TC), >=6 (2 TC)
    while tm > row_quant and pl.cdiv(M, tm) < min_steps:
        tm //= 2
    grid = pl.cdiv(M, tm)
    M_pad = grid * tm
    TR = tm // G

    # Patch matrix: pad rows to M_pad, contraction to Kp (bf16 already).
    A = patches.reshape(M, Kdim)
    A = jnp.pad(A, ((0, M_pad - M), (0, Kp - Kdim)))
    # Pack G consecutive spatial rows into one kernel row -> lane-dense loads/stores.
    A2 = A.reshape(M_pad // G, G * Kp)

    # Weights (Cout,Cin,kh,kw) -> (kh,kw,Cin,Cout) -> (Kdim,Cout), matching the
    # (kh,kw,cin) patch ordering; fold eval-mode BN scale into the columns.
    inv_std = 1.0 / jnp.sqrt(bn_var.astype(jnp.float32) + eps)
    scale = bn_gamma.astype(jnp.float32) * inv_std
    shift = bn_beta.astype(jnp.float32) - bn_mean.astype(jnp.float32) * scale
    Wmat = jnp.transpose(conv_w, (2, 3, 1, 0)).reshape(Kdim, Cout).astype(jnp.float32)
    Wmat = Wmat * scale[None, :]
    Wmat = jnp.pad(Wmat, ((0, Kp - Kdim), (0, Cp - Cout)))
    # Block-diagonal kron(I_G, W): output row r holds the Cp channels of spatial
    # positions G*r .. G*r+G-1 side by side -> unmasked full-width stores.
    W2 = jnp.kron(jnp.eye(G, dtype=jnp.float32), Wmat).astype(jnp.bfloat16)
    shift2 = jnp.tile(jnp.pad(shift, (0, Cp - Cout)), G).reshape(1, G * Cp)

    out2 = pl.pallas_call(
        conv_bn_act_kernel,
        out_shape=jax.ShapeDtypeStruct((M_pad // G, G * Cp), out_dtype),
        grid_spec=pltpu.PrefetchScalarGridSpec(
            num_scalar_prefetch=0,
            grid=(grid,),
            in_specs=[
                pl.BlockSpec((TR, G * Kp), lambda i: (i, 0)),
                pl.BlockSpec((G * Kp, G * Cp), lambda i: (0, 0)),
                pl.BlockSpec((1, G * Cp), lambda i: (0, 0)),
            ],
            out_specs=pl.BlockSpec((TR, G * Cp), lambda i: (i, 0)),
        ),
        compiler_params=pltpu.CompilerParams(
            dimension_semantics=("parallel",),
            # Fuse the im2col producer chain into the patch operand (avoid the
            # HBM round trip of the inflated patch matrix where possible).
            allow_input_fusion=[True, False, False],
            # Single explicit cap valid on v5e / v6e / v7x.
            vmem_limit_bytes=32 * 1024 * 1024,
        ),
    )(A2, W2, shift2)

    # Rows M..M_pad (= relu(shift), non-zero) and channels Cout..Cp of the flat
    # output are padding garbage; they are sliced off here and out2 must never
    # be consumed pre-slice.
    out_flat = out2.reshape(M_pad, Cp)[:M, :Cout]
    return out_flat.reshape(N, Ho, Wo, Cout)


def conv2d_bn_act(x_nchw, conv_w, bn_gamma, bn_beta, bn_mean, bn_var,
                  *, stride=2, eps=1e-5, out_dtype=jnp.bfloat16):
    """NCHW wrapper matching the PyTorch module I/O.  In a full Make_LiteLayer
    stack chain conv2d_bn_act_nhwc directly — each per-layer NCHW<->NHWC
    transpose is an extra HBM read+write pass comparable to the kernel itself."""
    x_nhwc = jnp.transpose(x_nchw, (0, 2, 3, 1))
    out_nhwc = conv2d_bn_act_nhwc(x_nhwc, conv_w, bn_gamma, bn_beta,
                                  bn_mean, bn_var, stride=stride, eps=eps,
                                  out_dtype=out_dtype)
    return jnp.transpose(out_nhwc, (0, 3, 1, 2))


# --------------------------------- main ----------------------------------- #
if __name__ == "__main__":
    key = jax.random.PRNGKey(0)
    k_x, k_w, k_g, k_b, k_m, k_v = jax.random.split(key, 6)

    # Small shapes consistent with the module: batch=2, Cin=4, H=W=16, Cout=32.
    N, Cin, H, W = 2, 4, 16, 16
    Cout, K = 32, 7
    stride = 2

    x = jax.random.normal(k_x, (N, Cin, H, W), dtype=jnp.float32)
    conv_w = 0.05 * jax.random.normal(k_w, (Cout, Cin, K, K), dtype=jnp.float32)
    bn_gamma = 1.0 + 0.1 * jax.random.normal(k_g, (Cout,), dtype=jnp.float32)
    bn_beta = 0.1 * jax.random.normal(k_b, (Cout,), dtype=jnp.float32)
    bn_mean = 0.1 * jax.random.normal(k_m, (Cout,), dtype=jnp.float32)
    bn_var = jnp.abs(1.0 + 0.1 * jax.random.normal(k_v, (Cout,), dtype=jnp.float32))

    fwd = jax.jit(functools.partial(conv2d_bn_act, stride=stride))
    out = fwd(x, conv_w, bn_gamma, bn_beta, bn_mean, bn_var)
    jax.block_until_ready(out)

    # Pure-JAX f32 reference (conv + eval-BN + ReLU).
    ref = jax.lax.conv_general_dilated(
        x, conv_w, window_strides=(stride, stride), padding=((3, 3), (3, 3)),
        dimension_numbers=("NCHW", "OIHW", "NCHW"))
    inv_std = 1.0 / jnp.sqrt(bn_var + 1e-5)
    ref = (ref - bn_mean[None, :, None, None]) * (bn_gamma * inv_std)[None, :, None, None] \
          + bn_beta[None, :, None, None]
    ref = jnp.maximum(ref, 0.0)

    assert out.shape == (N, Cout, H // stride, W // stride), out.shape
    err = jnp.abs(out.astype(jnp.float32) - ref)
    max_err = float(jnp.max(err))
    mean_err = float(jnp.mean(err))
    # bf16 matmul operands + bf16 output vs. f32 reference -> small rounding diff.
    assert max_err < 1e-1, max_err
    assert mean_err < 1e-2, mean_err

    print("KERNEL_OK")
</pallas_src>

<mosaic_0001>
module attributes {stable_mosaic.version = 11 : i64} {
  func.func @conv_bn_act_kernel(%arg0: i32, %arg1: memref<8x1024xbf16, #tpu.memory_space<vmem>>, %arg2: memref<1024x128xbf16, #tpu.memory_space<vmem>>, %arg3: memref<1x128xf32, #tpu.memory_space<vmem>>, %arg4: memref<8x128xbf16, #tpu.memory_space<vmem>>) attributes {dimension_semantics = [#tpu.dimension_semantics<parallel>], iteration_bounds = array<i64: 4>, scalar_prefetch = 0 : i64, scratch_operands = 0 : i64, tpu.core_type = #tpu.core_type<tc>, window_params = [{transform_indices = @transform_0, window_bounds = array<i64: 8, 1024>}, {pipeline_mode = #tpu.pipeline_mode<synchronous>, transform_indices = @transform_1, window_bounds = array<i64: 1024, 128>}, {pipeline_mode = #tpu.pipeline_mode<synchronous>, transform_indices = @transform_2, window_bounds = array<i64: 1, 128>}, {transform_indices = @transform_3, window_bounds = array<i64: 8, 128>}]} {
    %c0 = arith.constant 0 : index
    %c0_0 = arith.constant 0 : index
    %0 = vector.load %arg1[%c0, %c0_0] : memref<8x1024xbf16, #tpu.memory_space<vmem>>, vector<8x1024xbf16>
    %c0_1 = arith.constant 0 : index
    %c0_2 = arith.constant 0 : index
    %1 = vector.load %arg2[%c0_1, %c0_2] : memref<1024x128xbf16, #tpu.memory_space<vmem>>, vector<1024x128xbf16>
    %cst = arith.constant dense<0.000000e+00> : vector<8x128xf32>
    %2 = tpu.matmul %0, %1, %cst {dimension_numbers = #tpu.dot_dimension_numbers<[1], [0], [0], [1], [0, 0, 1, 1], [], []>} : vector<8x1024xbf16>, vector<1024x128xbf16>, vector<8x128xf32> -> vector<8x128xf32>
    %c0_3 = arith.constant 0 : index
    %c0_4 = arith.constant 0 : index
    %3 = vector.load %arg3[%c0_3, %c0_4] : memref<1x128xf32, #tpu.memory_space<vmem>>, vector<1x128xf32>
    %4 = vector.broadcast %3 : vector<1x128xf32> to vector<8x128xf32>
    %5 = arith.addf %2, %4 : vector<8x128xf32>
    %cst_5 = arith.constant 0.000000e+00 : f32
    %6 = vector.broadcast %cst_5 : f32 to vector<8x128xf32>
    %7 = arith.maximumf %5, %6 : vector<8x128xf32>
    %8 = arith.truncf %7 : vector<8x128xf32> to vector<8x128xbf16>
    %c0_6 = arith.constant 0 : index
    %c0_7 = arith.constant 0 : index
    %9 = vector.load %arg4[%c0_6, %c0_7] : memref<8x128xbf16, #tpu.memory_space<vmem>>, vector<8x128xbf16>
    tpu.vector_store %arg4[%c0_6, %c0_7], %8 {strides = array<i32>} : memref<8x128xbf16, #tpu.memory_space<vmem>>, vector<8x128xbf16>,
    return
  }
  func.func @transform_0(%arg0: i32) -> (i32, i32) {
    %c0_i32 = arith.constant 0 : i32
    %c0_i32_0 = arith.constant 0 : i32
    return %arg0, %c0_i32 : i32, i32
  }
  func.func @transform_1(%arg0: i32) -> (i32, i32) {
    %c0_i32 = arith.constant 0 : i32
    %c0_i32_0 = arith.constant 0 : i32
    %c0_i32_1 = arith.constant 0 : i32
    return %c0_i32, %c0_i32_0 : i32, i32
  }
  func.func @transform_2(%arg0: i32) -> (i32, i32) {
    %c0_i32 = arith.constant 0 : i32
    %c0_i32_0 = arith.constant 0 : i32
    %c0_i32_1 = arith.constant 0 : i32
    return %c0_i32, %c0_i32_0 : i32, i32
  }
  func.func @transform_3(%arg0: i32) -> (i32, i32) {
    %c0_i32 = arith.constant 0 : i32
    %c0_i32_0 = arith.constant 0 : i32
    return %arg0, %c0_i32 : i32, i32
  }
}

</mosaic_0001>

<llo_original>
// kernel: tile.8
$region0: #{tile.8}
  #allocation0 [shape = 's32[1]{0}', space=sflag, size = 0x4, scoped, tag = 'scoped memory for tile.8']
  %s0 = inlined_call_operand.vmem [shape: f32[32], index: 0, kind: input, shape index: {}]
  %s1 = inlined_call_operand.vmem [shape: f32[4,32], index: 1, kind: output, shape index: {}]
  // Predicated region
  $region2: #{tile.8} parent=0 // pred_check
    _
  $region3: #{tile.8} parent=0 // pred_check_branch
    %3 = sbr.rel (0) target = $region5
  $region4: #{tile.8} parent=0 // pred_region
    _
  $region5: #{tile.8} parent=0 // pred_fallthru
    _
  %v4 = vld [vmem:[%s0] ss:$0 sm:$0xff]
  %5 = vst [vmem:[%s1] sm:$0xf] %v4

// kernel: tile.9
$region0: #{tile.9}
  %s0 = inlined_call_operand.vmem [shape: f32[4,32], index: 0, kind: input, shape index: {}]
  %s1 = inlined_call_operand.vmem [shape: f32[1,128], index: 1, kind: output, shape index: {}]
  $region1: #{tile.9} parent=0
    #allocation0 [shape = 'u8[4096]{0}', space=vmem, size = 0x1000, scoped, tag = 'scoped mem for output reshape']
    #allocation1 [shape = 'u8[4096]{0}', space=vmem, size = 0x1000, scoped, tag = 'scoped mem for input reshape']
    %s3 = sshll.u32 1, 4
    %s4 = ssub.s32 %s3, 1
    %v5 = vld [vmem:[%s0] sm:%s4]
    %6 = vst [vmem:[#allocation1] sm:%s4] %v5
    %v7 = vld [vmem:[#allocation1] sm:$0x1]
    %vm8 = vcmask 261120
    %9 = vst.msk [vmem:[#allocation0] sm:$0x1] %vm8, %v7
    %s10 = scalar_lea.vmem [#allocation1], 3
    %v11 = vld [vmem:[%s10] sm:$0x1]
    %12 = vrot.lane.b32.xlu0 %v11, 96
    %v13 = vpop.permute.xlu0 %12
    %vm14 = vcmask 1048320
    %15 = vst.msk [vmem:[#allocation0] sm:$0x1] %vm14, %v13
    %s16 = scalar_lea.vmem [#allocation1], 2
    %v17 = vld [vmem:[%s16] sm:$0x1]
    %18 = vrot.lane.b32.xlu0 %v17, 64
    %v19 = vpop.permute.xlu0 %18
    %vm20 = vcmask 785920
    %21 = vst.msk [vmem:[#allocation0] sm:$0x1] %vm20, %v19
    %s22 = scalar_lea.vmem [#allocation1], 1
    %v23 = vld [vmem:[%s22] sm:$0x1]
    %24 = vrot.lane.b32.xlu0 %v23, 32
    %v25 = vpop.permute.xlu0 %24
    %vm26 = vcmask 523520
    %27 = vst.msk [vmem:[#allocation0] sm:$0x1] %vm26, %v25
    %s29 = sshll.u32 1, 1
    %s30 = ssub.s32 %s29, 1
    %v32 = vld [vmem:[#allocation0] sm:%s30]
    %s33 = sshll.u32 1, 1
    %s34 = ssub.s32 %s33, 1
    %35 = vst [vmem:[%s1] sm:%s34] %v32

// kernel: conv2d_bn_act.1
$region0: #{conv2d_bn_act.1}
  #allocation0 [shape = 'u32[]', space=smem, size = 0x4, offset = 0x4, fixed_abs, tag = 'smem constant byte address 0x4 - core index']
  #allocation1 [shape = 'u32[144,128]{1,0:T(1,128)}', space=vmem, size = 0x12000, scoped, tag = 'internal scratch']
  %s0 = inlined_call_operand.vmem [shape: bf16[32,1024], index: 0, kind: input, shape index: {}]
  %s1 = inlined_call_operand.vmem [shape: bf16[1024,128], index: 1, kind: input, shape index: {}]
  %s2 = inlined_call_operand.vmem [shape: f32[1,128], index: 2, kind: input, shape index: {}]
  %s3 = inlined_call_operand.vmem [shape: bf16[32,128], index: 3, kind: output, shape index: {}]
  %s4 = sld [smem:[#allocation0]]
  $region45: #{conv2d_bn_act.1} parent=0
    _
  %s6 = ssub.s32 1, %s4
  %s7 = scalar_select 0, %s6, %s4
  loop: start=0, step=1, limit=6
  $region2: #{conv2d_bn_act.1} parent=0 // loop_pre_header
    _
  $region3: #{conv2d_bn_act.1} parent=0 // loop_header
    %s9 = sphi 0, %s13
    %p10 = scmp.ge.s32.totalorder %s9, 6
    %s19 = sphi 0, %s21
    %s22 = sphi 0, %s19
    %s23 = sphi 0, %s22
    %s39 = sphi 0, %s23
    %s43 = sphi 0, %s43
    %s45 = sphi 0, %s43
    %s46 = sphi 0, %s45
    %s60 = sphi 0, %s46
    %s64 = sphi 0, %s64
    %s66 = sphi 0, %s64
    %s67 = sphi 0, %s66
    %s81 = sphi 0, %s67
    %s87 = sphi 0, %s89
    %s90 = sphi 0, %s87
    %s91 = sphi 0, %s90
    %s107 = sphi 0, %s91
  $region4: #{conv2d_bn_act.1} parent=0 // loop_header_branch
    %12 = sbr.rel (%p10) target = $region8
  $region5: #{conv2d_bn_act.1} parent=0 // loop_body
    %s14 = ssub.s32 %s9, 1
    %s15 = ssub.s32 %s9, 2
    %s16 = sadd.s32 %s9, 1
    %s17 = ssub.s32 %s9, %s16
    %p18 = scmp.eq.s32.totalorder %s17, 0
    %s20 = sadd.s32 %s19, 1
    %s21 = scalar_select %p18, %s19, %s20
    %p24 = pneg %p18
    %p25 = scmp.eq.s32.totalorder %s9, 3
    %p26 = por %p24, %p25
    %p27 = scmp.ne.s32.totalorder %s19, %s22
    %p28 = scmp.eq.s32.totalorder %s9, 0
    %p29 = por %p27, %p28
    %p30 = scmp.ne.s32.totalorder %s19, %s22
    %p31 = scmp.eq.s32.totalorder %s14, 3
    %p32 = por %p30, %p31
    %p33 = scmp.ne.s32.totalorder %s22, %s23
    %p34 = scmp.eq.s32.totalorder %s14, 0
    %p35 = por %p33, %p34
    %p36 = scmp.ne.s32.totalorder %s22, %s23
    %p37 = scmp.eq.s32.totalorder %s15, 3
    %p38 = por %p36, %p37
    %p40 = scmp.ne.s32.totalorder %s23, %s39
    %p41 = scmp.eq.s32.totalorder %s15, 0
    %p42 = por %p40, %p41
    %s44 = sadd.s32 %s43, 1
    %p47 = scmp.eq.s32.totalorder %s9, 3
    %p48 = scmp.ne.s32.totalorder %s43, %s45
    %p49 = scmp.eq.s32.totalorder %s9, 0
    %p50 = por %p48, %p49
    %p51 = scmp.ne.s32.totalorder %s43, %s45
    %p52 = scmp.eq.s32.totalorder %s14, 3
    %p53 = por %p51, %p52
    %p54 = scmp.ne.s32.totalorder %s45, %s46
    %p55 = scmp.eq.s32.totalorder %s14, 0
    %p56 = por %p54, %p55
    %p57 = scmp.ne.s32.totalorder %s45, %s46
    %p58 = scmp.eq.s32.totalorder %s15, 3
    %p59 = por %p57, %p58
    %p61 = scmp.ne.s32.totalorder %s46, %s60
    %p62 = scmp.eq.s32.totalorder %s15, 0
    %p63 = por %p61, %p62
    %s65 = sadd.s32 %s64, 1
    %p68 = scmp.eq.s32.totalorder %s9, 3
    %p69 = scmp.ne.s32.totalorder %s64, %s66
    %p70 = scmp.eq.s32.totalorder %s9, 0
    %p71 = por %p69, %p70
    %p72 = scmp.ne.s32.totalorder %s64, %s66
    %p73 = scmp.eq.s32.totalorder %s14, 3
    %p74 = por %p72, %p73
    %p75 = scmp.ne.s32.totalorder %s66, %s67
    %p76 = scmp.eq.s32.totalorder %s14, 0
    %p77 = por %p75, %p76
    %p78 = scmp.ne.s32.totalorder %s66, %s67
    %p79 = scmp.eq.s32.totalorder %s15, 3
    %p80 = por %p78, %p79
    %p82 = scmp.ne.s32.totalorder %s67, %s81
    %p83 = scmp.eq.s32.totalorder %s15, 0
    %p84 = por %p82, %p83
    %s85 = ssub.s32 %s9, %s16
    %p86 = scmp.eq.s32.totalorder %s85, 0
    %s88 = sadd.s32 %s87, 1
    %s89 = scalar_select %p86, %s87, %s88
    %p92 = pneg %p86
    %p93 = scmp.eq.s32.totalorder %s9, 3
    %p94 = por %p92, %p93
    %p95 = scmp.ne.s32.totalorder %s87, %s90
    %p96 = scmp.eq.s32.totalorder %s9, 0
    %p97 = por %p95, %p96
    %p98 = scmp.ne.s32.totalorder %s87, %s90
    %p99 = scmp.eq.s32.totalorder %s14, 3
    %p100 = por %p98, %p99
    %p101 = scmp.ne.s32.totalorder %s90, %s91
    %p102 = scmp.eq.s32.totalorder %s14, 0
    %p103 = por %p101, %p102
    %p104 = scmp.ne.s32.totalorder %s90, %s91
    %p105 = scmp.eq.s32.totalorder %s15, 3
    %p106 = por %p104, %p105
    %p108 = scmp.ne.s32.totalorder %s91, %s107
    %p109 = scmp.eq.s32.totalorder %s15, 0
    %p110 = por %p108, %p109
    %p111 = scmp.le.s32.totalorder 1, %s9
    %p112 = scmp.lt.s32.totalorder %s9, 5
    %p113 = pnand %p111, %p112
    %p114 = pneg %p113
    // Predicated region
    $region9: #{conv2d_bn_act.1} parent=5 // pred_check
      _
    $region10: #{conv2d_bn_act.1} parent=5 // pred_check_branch
      %116 = sbr.rel (%p113) target = $region12
    $region11: #{conv2d_bn_act.1} parent=5 // pred_region
      %s117 = ssub.s32 %s9, 1
      // Predicated region
      $region13: #{conv2d_bn_act.1} parent=11 // pred_check
        %p118 = pneg %p56
      $region14: #{conv2d_bn_act.1} parent=11 // pred_check_branch
        %120 = sbr.rel (%p118) target = $region16
      $region15: #{conv2d_bn_act.1} parent=11 // pred_region
        _
      $region16: #{conv2d_bn_act.1} parent=11 // pred_fallthru
        _
      // Predicated region
      $region17: #{conv2d_bn_act.1} parent=11 // pred_check
        %p121 = pneg %p77
      $region18: #{conv2d_bn_act.1} parent=11 // pred_check_branch
        %123 = sbr.rel (%p121) target = $region20
      $region19: #{conv2d_bn_act.1} parent=11 // pred_region
        _
      $region20: #{conv2d_bn_act.1} parent=11 // pred_fallthru
        _
    $region12: #{conv2d_bn_act.1} parent=5 // pred_fallthru
      _
    %p124 = scmp.lt.s32.totalorder %s9, 4
    // Predicated region
    $region21: #{conv2d_bn_act.1} parent=5 // pred_check
      %p125 = pneg %p124
    $region22: #{conv2d_bn_act.1} parent=5 // pred_check_branch
      %127 = sbr.rel (%p125) target = $region24
    $region23: #{conv2d_bn_act.1} parent=5 // pred_region
      // Predicated region
      $region25: #{conv2d_bn_act.1} parent=23 // pred_check
        %p128 = pneg %p29
      $region26: #{conv2d_bn_act.1} parent=23 // pred_check_branch
        %130 = sbr.rel (%p128) target = $region28
      $region27: #{conv2d_bn_act.1} parent=23 // pred_region
        %p131 = scmp.lt.s32.totalorder %s9, 3
        %s132 = scalar_select %p131, %s9, 3
        %s133 = smul.addr %s132, 8
        %s134 = smul.addr %s133, 4
        %s135 = scalar_lea.vmem %s0, %s134
      $region28: #{conv2d_bn_act.1} parent=23 // pred_fallthru
        _
    $region24: #{conv2d_bn_act.1} parent=5 // pred_fallthru
      _
    %p136 = scmp.le.s32.totalorder 1, %s9
    %p137 = scmp.lt.s32.totalorder %s9, 5
    %p138 = pnand %p136, %p137
    %p139 = pneg %p138
    // Predicated region
    $region29: #{conv2d_bn_act.1} parent=5 // pred_check
      _
    $region30: #{conv2d_bn_act.1} parent=5 // pred_check_branch
      %141 = sbr.rel (%p138) target = $region32
    $region31: #{conv2d_bn_act.1} parent=5 // pred_region
      %s142 = ssub.s32 %s9, 1
      %p143 = scmp.lt.s32.totalorder %s14, 3
      %s144 = scalar_select %p143, %s14, 3
      %s145 = smul.addr %s144, 8
      %s146 = smul.addr %s145, 4
      %s147 = scalar_lea.vmem %s0, %s146
      %p148 = pneg %p35
      %p149 = pneg %p32
      %p150 = pneg %p56
      %p151 = pneg %p53
      %p152 = pneg %p77
      %p153 = pneg %p74
      %p154 = pneg %p103
      %p155 = pneg %p100
      %p156 = scmp.lt.s32.totalorder %s14, 3
      %s157 = scalar_select %p156, %s14, 3
      %s158 = smul.addr %s157, 4
      %s159 = scalar_lea.vmem %s3, %s158
      %p160 = scmp.lt.s32.totalorder %s14, 3
      %s161 = scalar_select %p160, %s14, 3
      %s162 = smul.addr %s161, 8
      %s163 = smul.addr %s162, 4
      %s164 = scalar_lea.vmem %s0, %s163
      %p165 = scmp.lt.s32.totalorder %s14, 3
      %s166 = scalar_select %p165, %s14, 3
      %s167 = smul.addr %s166, 4
      %s168 = scalar_lea.vmem %s3, %s167
      %v170 = vld [vmem:[%s164] sm:$0xff]
      %v171 = vld [vmem:[%s164 + $0x8] sm:$0xff]
      %v172 = vld [vmem:[%s164 + $0x10] sm:$0xff]
      %v173 = vld [vmem:[%s164 + $0x18] sm:$0xff]
      %v174 = vld [vmem:[%s1] sm:$0xf]
      %v175 = vld [vmem:[%s1 + $0x4] sm:$0xf]
      %v176 = vld [vmem:[%s1 + $0x8] sm:$0xf]
      %v177 = vld [vmem:[%s1 + $0xc] sm:$0xf]
      %v178 = vld [vmem:[%s1 + $0x10] sm:$0xf]
      %v179 = vld [vmem:[%s1 + $0x14] sm:$0xf]
      %v180 = vld [vmem:[%s1 + $0x18] sm:$0xf]
      %v181 = vld [vmem:[%s1 + $0x1c] sm:$0xf]
      %v182 = vld [vmem:[%s1 + $0x20] sm:$0xf]
      %v183 = vld [vmem:[%s1 + $0x24] sm:$0xf]
      %v184 = vld [vmem:[%s1 + $0x28] sm:$0xf]
      %v185 = vld [vmem:[%s1 + $0x2c] sm:$0xf]
      %v186 = vld [vmem:[%s1 + $0x30] sm:$0xf]
      %v187 = vld [vmem:[%s1 + $0x34] sm:$0xf]
      %v188 = vld [vmem:[%s1 + $0x38] sm:$0xf]
      %v189 = vld [vmem:[%s1 + $0x3c] sm:$0xf]
      %v190 = vld [vmem:[%s1 + $0x40] sm:$0xf]
      %v191 = vld [vmem:[%s1 + $0x44] sm:$0xf]
      %v192 = vld [vmem:[%s1 + $0x48] sm:$0xf]
      %v193 = vld [vmem:[%s1 + $0x4c] sm:$0xf]
      %v194 = vld [vmem:[%s1 + $0x50] sm:$0xf]
      %v195 = vld [vmem:[%s1 + $0x54] sm:$0xf]
      %v196 = vld [vmem:[%s1 + $0x58] sm:$0xf]
      %v197 = vld [vmem:[%s1 + $0x5c] sm:$0xf]
      %v198 = vld [vmem:[%s1 + $0x60] sm:$0xf]
      %v199 = vld [vmem:[%s1 + $0x64] sm:$0xf]
      %v200 = vld [vmem:[%s1 + $0x68] sm:$0xf]
      %v201 = vld [vmem:[%s1 + $0x6c] sm:$0xf]
      %v202 = vld [vmem:[%s1 + $0x70] sm:$0xf]
      %v203 = vld [vmem:[%s1 + $0x74] sm:$0xf]
      %v204 = vld [vmem:[%s1 + $0x78] sm:$0xf]
      %v205 = vld [vmem:[%s1 + $0x7c] sm:$0xf]
      %v206 = vld [vmem:[%s1 + $0x80] sm:$0xf]
      %v207 = vld [vmem:[%s1 + $0x84] sm:$0xf]
      %v208 = vld [vmem:[%s1 + $0x88] sm:$0xf]
      %v209 = vld [vmem:[%s1 + $0x8c] sm:$0xf]
      %v210 = vld [vmem:[%s1 + $0x90] sm:$0xf]
      %v211 = vld [vmem:[%s1 + $0x94] sm:$0xf]
      %v212 = vld [vmem:[%s1 + $0x98] sm:$0xf]
      %v213 = vld [vmem:[%s1 + $0x9c] sm:$0xf]
      %v214 = vld [vmem:[%s1 + $0xa0] sm:$0xf]
      %v215 = vld [vmem:[%s1 + $0xa4] sm:$0xf]
      %v216 = vld [vmem:[%s1 + $0xa8] sm:$0xf]
      %v217 = vld [vmem:[%s1 + $0xac] sm:$0xf]
      %v218 = vld [vmem:[%s1 + $0xb0] sm:$0xf]
      %v219 = vld [vmem:[%s1 + $0xb4] sm:$0xf]
      %v220 = vld [vmem:[%s1 + $0xb8] sm:$0xf]
      %v221 = vld [vmem:[%s1 + $0xbc] sm:$0xf]
      %v222 = vld [vmem:[%s1 + $0xc0] sm:$0xf]
      %v223 = vld [vmem:[%s1 + $0xc4] sm:$0xf]
      %v224 = vld [vmem:[%s1 + $0xc8] sm:$0xf]
      %v225 = vld [vmem:[%s1 + $0xcc] sm:$0xf]
      %v226 = vld [vmem:[%s1 + $0xd0] sm:$0xf]
      %v227 = vld [vmem:[%s1 + $0xd4] sm:$0xf]
      %v228 = vld [vmem:[%s1 + $0xd8] sm:$0xf]
      %v229 = vld [vmem:[%s1 + $0xdc] sm:$0xf]
      %v230 = vld [vmem:[%s1 + $0xe0] sm:$0xf]
      %v231 = vld [vmem:[%s1 + $0xe4] sm:$0xf]
      %v232 = vld [vmem:[%s1 + $0xe8] sm:$0xf]
      %v233 = vld [vmem:[%s1 + $0xec] sm:$0xf]
      %v234 = vld [vmem:[%s1 + $0xf0] sm:$0xf]
      %v235 = vld [vmem:[%s1 + $0xf4] sm:$0xf]
      %v236 = vld [vmem:[%s1 + $0xf8] sm:$0xf]
      %v237 = vld [vmem:[%s1 + $0xfc] sm:$0xf]
      %v238 = vld [vmem:[%s1 + $0x100] sm:$0xf]
      %v239 = vld [vmem:[%s1 + $0x104] sm:$0xf]
      %v240 = vld [vmem:[%s1 + $0x108] sm:$0xf]
      %v241 = vld [vmem:[%s1 + $0x10c] sm:$0xf]
      %v242 = vld [vmem:[%s1 + $0x110] sm:$0xf]
      %v243 = vld [vmem:[%s1 + $0x114] sm:$0xf]
      %v244 = vld [vmem:[%s1 + $0x118] sm:$0xf]
      %v245 = vld [vmem:[%s1 + $0x11c] sm:$0xf]
      %v246 = vld [vmem:[%s1 + $0x120] sm:$0xf]
      %v247 = vld [vmem:[%s1 + $0x124] sm:$0xf]
      %v248 = vld [vmem:[%s1 + $0x128] sm:$0xf]
      %v249 = vld [vmem:[%s1 + $0x12c] sm:$0xf]
      %v250 = vld [vmem:[%s1 + $0x130] sm:$0xf]
      %v251 = vld [vmem:[%s1 + $0x134] sm:$0xf]
      %v252 = vld [vmem:[%s1 + $0x138] sm:$0xf]
      %v253 = vld [vmem:[%s1 + $0x13c] sm:$0xf]
      %v254 = vld [vmem:[%s1 + $0x140] sm:$0xf]
      %v255 = vld [vmem:[%s1 + $0x144] sm:$0xf]
      %v256 = vld [vmem:[%s1 + $0x148] sm:$0xf]
      %v257 = vld [vmem:[%s1 + $0x14c] sm:$0xf]
      %v258 = vld [vmem:[%s1 + $0x150] sm:$0xf]
      %v259 = vld [vmem:[%s1 + $0x154] sm:$0xf]
      %v260 = vld [vmem:[%s1 + $0x158] sm:$0xf]
      %v261 = vld [vmem:[%s1 + $0x15c] sm:$0xf]
      %v262 = vld [vmem:[%s1 + $0x160] sm:$0xf]
      %v263 = vld [vmem:[%s1 + $0x164] sm:$0xf]
      %v264 = vld [vmem:[%s1 + $0x168] sm:$0xf]
      %v265 = vld [vmem:[%s1 + $0x16c] sm:$0xf]
      %v266 = vld [vmem:[%s1 + $0x170] sm:$0xf]
      %v267 = vld [vmem:[%s1 + $0x174] sm:$0xf]
      %v268 = vld [vmem:[%s1 + $0x178] sm:$0xf]
      %v269 = vld [vmem:[%s1 + $0x17c] sm:$0xf]
      %v270 = vld [vmem:[%s1 + $0x180] sm:$0xf]
      %v271 = vld [vmem:[%s1 + $0x184] sm:$0xf]
      %v272 = vld [vmem:[%s1 + $0x188] sm:$0xf]
      %v273 = vld [vmem:[%s1 + $0x18c] sm:$0xf]
      %v274 = vld [vmem:[%s1 + $0x190] sm:$0xf]
      %v275 = vld [vmem:[%s1 + $0x194] sm:$0xf]
      %v276 = vld [vmem:[%s1 + $0x198] sm:$0xf]
      %v277 = vld [vmem:[%s1 + $0x19c] sm:$0xf]
      %v278 = vld [vmem:[%s1 + $0x1a0] sm:$0xf]
      %v279 = vld [vmem:[%s1 + $0x1a4] sm:$0xf]
      %v280 = vld [vmem:[%s1 + $0x1a8] sm:$0xf]
      %v281 = vld [vmem:[%s1 + $0x1ac] sm:$0xf]
      %v282 = vld [vmem:[%s1 + $0x1b0] sm:$0xf]
      %v283 = vld [vmem:[%s1 + $0x1b4] sm:$0xf]
      %v284 = vld [vmem:[%s1 + $0x1b8] sm:$0xf]
      %v285 = vld [vmem:[%s1 + $0x1bc] sm:$0xf]
      %v286 = vld [vmem:[%s1 + $0x1c0] sm:$0xf]
      %v287 = vld [vmem:[%s1 + $0x1c4] sm:$0xf]
      %v288 = vld [vmem:[%s1 + $0x1c8] sm:$0xf]
      %v289 = vld [vmem:[%s1 + $0x1cc] sm:$0xf]
      %v290 = vld [vmem:[%s1 + $0x1d0] sm:$0xf]
      %v291 = vld [vmem:[%s1 + $0x1d4] sm:$0xf]
      %v292 = vld [vmem:[%s1 + $0x1d8] sm:$0xf]
      %v293 = vld [vmem:[%s1 + $0x1dc] sm:$0xf]
      %v294 = vld [vmem:[%s1 + $0x1e0] sm:$0xf]
      %v295 = vld [vmem:[%s1 + $0x1e4] sm:$0xf]
      %v296 = vld [vmem:[%s1 + $0x1e8] sm:$0xf]
      %v297 = vld [vmem:[%s1 + $0x1ec] sm:$0xf]
      %v298 = vld [vmem:[%s1 + $0x1f0] sm:$0xf]
      %v299 = vld [vmem:[%s1 + $0x1f4] sm:$0xf]
      %v300 = vld [vmem:[%s1 + $0x1f8] sm:$0xf]
      %v301 = vld [vmem:[%s1 + $0x1fc] sm:$0xf]
      %v302 = vld [vmem:[%s2] sm:$0x1]
      %v304 = vlaneseq
      %v305 = vshrl.u32 %v304, 7
      %v306 = vsub.s32 0, %v305
      %v307 = vrot.slane %v302, %v306
      %v313 = vunpack.c.l.b16 %v170
      %v314 = vunpack.c.h.b16 %v170
      %v315 = vunpack.c.l.b16 %v171
      %v316 = vunpack.c.h.b16 %v171
      %v317 = vunpack.c.l.b16 %v172
      %v318 = vunpack.c.h.b16 %v172
      %v319 = vunpack.c.l.b16 %v173
      %v320 = vunpack.c.h.b16 %v173
      %v321 = vpack.c.b16 %v313, %v313
      %v322 = vpack.c.b16 %v314, %v314
      %v323 = vpack.c.b16 %v315, %v315
      %v324 = vpack.c.b16 %v316, %v316
      %v325 = vpack.c.b16 %v317, %v317
      %v326 = vpack.c.b16 %v318, %v318
      %v327 = vpack.c.b16 %v319, %v319
      %v328 = vpack.c.b16 %v320, %v320
      %v465 = vunpack.c.l.b16 %v174
      %v466 = vunpack.c.l.b16 %v175
      %v467 = vunpack.c.l.b16 %v176
      %v468 = vunpack.c.l.b16 %v177
      %v469 = vunpack.c.l.b16 %v178
      %v470 = vunpack.c.l.b16 %v179
      %v471 = vunpack.c.l.b16 %v180
      %v472 = vunpack.c.l.b16 %v181
      %v473 = vunpack.c.l.b16 %v182
      %v474 = vunpack.c.l.b16 %v183
      %v475 = vunpack.c.l.b16 %v184
      %v476 = vunpack.c.l.b16 %v185
      %v477 = vunpack.c.l.b16 %v186
      %v478 = vunpack.c.l.b16 %v187
      %v479 = vunpack.c.l.b16 %v188
      %v480 = vunpack.c.l.b16 %v189
      %v481 = vunpack.c.l.b16 %v190
      %v482 = vunpack.c.l.b16 %v191
      %v483 = vunpack.c.l.b16 %v192
      %v484 = vunpack.c.l.b16 %v193
      %v485 = vunpack.c.l.b16 %v194
      %v486 = vunpack.c.l.b16 %v195
      %v487 = vunpack.c.l.b16 %v196
      %v488 = vunpack.c.l.b16 %v197
      %v489 = vunpack.c.l.b16 %v198
      %v490 = vunpack.c.l.b16 %v199
      %v491 = vunpack.c.l.b16 %v200
      %v492 = vunpack.c.l.b16 %v201
      %v493 = vunpack.c.l.b16 %v202
      %v494 = vunpack.c.l.b16 %v203
      %v495 = vunpack.c.l.b16 %v204
      %v496 = vunpack.c.l.b16 %v205
      %v497 = vunpack.c.l.b16 %v206
      %v498 = vunpack.c.l.b16 %v207
      %v499 = vunpack.c.l.b16 %v208
      %v500 = vunpack.c.l.b16 %v209
      %v501 = vunpack.c.l.b16 %v210
      %v502 = vunpack.c.l.b16 %v211
      %v503 = vunpack.c.l.b16 %v212
      %v504 = vunpack.c.l.b16 %v213
      %v505 = vunpack.c.l.b16 %v214
      %v506 = vunpack.c.l.b16 %v215
      %v507 = vunpack.c.l.b16 %v216
      %v508 = vunpack.c.l.b16 %v217
      %v509 = vunpack.c.l.b16 %v218
      %v510 = vunpack.c.l.b16 %v219
      %v511 = vunpack.c.l.b16 %v220
      %v512 = vunpack.c.l.b16 %v221
      %v513 = vunpack.c.l.b16 %v222
      %v514 = vunpack.c.l.b16 %v223
      %v515 = vunpack.c.l.b16 %v224
      %v516 = vunpack.c.l.b16 %v225
      %v517 = vunpack.c.l.b16 %v226
      %v518 = vunpack.c.l.b16 %v227
      %v519 = vunpack.c.l.b16 %v228
      %v520 = vunpack.c.l.b16 %v229
      %v521 = vunpack.c.l.b16 %v230
      %v522 = vunpack.c.l.b16 %v231
      %v523 = vunpack.c.l.b16 %v232
      %v524 = vunpack.c.l.b16 %v233
      %v525 = vunpack.c.l.b16 %v234
      %v526 = vunpack.c.l.b16 %v235
      %v527 = vunpack.c.l.b16 %v236
      %v528 = vunpack.c.l.b16 %v237
      %v529 = vunpack.c.l.b16 %v238
      %v530 = vunpack.c.l.b16 %v239
      %v531 = vunpack.c.l.b16 %v240
      %v532 = vunpack.c.l.b16 %v241
      %v533 = vunpack.c.l.b16 %v242
      %v534 = vunpack.c.l.b16 %v243
      %v535 = vunpack.c.l.b16 %v244
      %v536 = vunpack.c.l.b16 %v245
      %v537 = vunpack.c.l.b16 %v246
      %v538 = vunpack.c.l.b16 %v247
      %v539 = vunpack.c.l.b16 %v248
      %v540 = vunpack.c.l.b16 %v249
      %v541 = vunpack.c.l.b16 %v250
      %v542 = vunpack.c.l.b16 %v251
      %v543 = vunpack.c.l.b16 %v252
      %v544 = vunpack.c.l.b16 %v253
      %v545 = vunpack.c.l.b16 %v254
      %v546 = vunpack.c.l.b16 %v255
      %v547 = vunpack.c.l.b16 %v256
      %v548 = vunpack.c.l.b16 %v257
      %v549 = vunpack.c.l.b16 %v258
      %v550 = vunpack.c.l.b16 %v259
      %v551 = vunpack.c.l.b16 %v260
      %v552 = vunpack.c.l.b16 %v261
      %v553 = vunpack.c.l.b16 %v262
      %v554 = vunpack.c.l.b16 %v263
      %v555 = vunpack.c.l.b16 %v264
      %v556 = vunpack.c.l.b16 %v265
      %v557 = vunpack.c.l.b16 %v266
      %v558 = vunpack.c.l.b16 %v267
      %v559 = vunpack.c.l.b16 %v268
      %v560 = vunpack.c.l.b16 %v269
      %v561 = vunpack.c.l.b16 %v270
      %v562 = vunpack.c.l.b16 %v271
      %v563 = vunpack.c.l.b16 %v272
      %v564 = vunpack.c.l.b16 %v273
      %v565 = vunpack.c.l.b16 %v274
      %v566 = vunpack.c.l.b16 %v275
      %v567 = vunpack.c.l.b16 %v276
      %v568 = vunpack.c.l.b16 %v277
      %v569 = vunpack.c.l.b16 %v278
      %v570 = vunpack.c.l.b16 %v279
      %v571 = vunpack.c.l.b16 %v280
      %v572 = vunpack.c.l.b16 %v281
      %v573 = vunpack.c.l.b16 %v282
      %v574 = vunpack.c.l.b16 %v283
      %v575 = vunpack.c.l.b16 %v284
      %v576 = vunpack.c.l.b16 %v285
      %v577 = vunpack.c.l.b16 %v286
      %v578 = vunpack.c.l.b16 %v287
      %v579 = vunpack.c.l.b16 %v288
      %v580 = vunpack.c.l.b16 %v289
      %v581 = vunpack.c.l.b16 %v290
      %v582 = vunpack.c.l.b16 %v291
      %v583 = vunpack.c.l.b16 %v292
      %v584 = vunpack.c.l.b16 %v293
      %v585 = vunpack.c.l.b16 %v294
      %v586 = vunpack.c.l.b16 %v295
      %v587 = vunpack.c.l.b16 %v296
      %v588 = vunpack.c.l.b16 %v297
      %v589 = vunpack.c.l.b16 %v298
      %v590 = vunpack.c.l.b16 %v299
      %v591 = vunpack.c.l.b16 %v300
      %v592 = vunpack.c.l.b16 %v301
      %v593 = vpack.c.b16 %v466, %v465
      %v594 = vpack.c.b16 %v468, %v467
      %v595 = vpack.c.b16 %v470, %v469
      %v596 = vpack.c.b16 %v472, %v471
      %v597 = vpack.c.b16 %v474, %v473
      %v598 = vpack.c.b16 %v476, %v475
      %v599 = vpack.c.b16 %v478, %v477
      %v600 = vpack.c.b16 %v480, %v479
      %v601 = vpack.c.b16 %v482, %v481
      %v602 = vpack.c.b16 %v484, %v483
      %v603 = vpack.c.b16 %v486, %v485
      %v604 = vpack.c.b16 %v488, %v487
      %v605 = vpack.c.b16 %v490, %v489
      %v606 = vpack.c.b16 %v492, %v491
      %v607 = vpack.c.b16 %v494, %v493
      %v608 = vpack.c.b16 %v496, %v495
      %v609 = vpack.c.b16 %v498, %v497
      %v610 = vpack.c.b16 %v500, %v499
      %v611 = vpack.c.b16 %v502, %v501
      %v612 = vpack.c.b16 %v504, %v503
      %v613 = vpack.c.b16 %v506, %v505
      %v614 = vpack.c.b16 %v508, %v507
      %v615 = vpack.c.b16 %v510, %v509
      %v616 = vpack.c.b16 %v512, %v511
      %v617 = vpack.c.b16 %v514, %v513
      %v618 = vpack.c.b16 %v516, %v515
      %v619 = vpack.c.b16 %v518, %v517
      %v620 = vpack.c.b16 %v520, %v519
      %v621 = vpack.c.b16 %v522, %v521
      %v622 = vpack.c.b16 %v524, %v523
      %v623 = vpack.c.b16 %v526, %v525
      %v624 = vpack.c.b16 %v528, %v527
      %v625 = vpack.c.b16 %v530, %v529
      %v626 = vpack.c.b16 %v532, %v531
      %v627 = vpack.c.b16 %v534, %v533
      %v628 = vpack.c.b16 %v536, %v535
      %v629 = vpack.c.b16 %v538, %v537
      %v630 = vpack.c.b16 %v540, %v539
      %v631 = vpack.c.b16 %v542, %v541
      %v632 = vpack.c.b16 %v544, %v543
      %v633 = vpack.c.b16 %v546, %v545
      %v634 = vpack.c.b16 %v548, %v547
      %v635 = vpack.c.b16 %v550, %v549
      %v636 = vpack.c.b16 %v552, %v551
      %v637 = vpack.c.b16 %v554, %v553
      %v638 = vpack.c.b16 %v556, %v555
      %v639 = vpack.c.b16 %v558, %v557
      %v640 = vpack.c.b16 %v560, %v559
      %v641 = vpack.c.b16 %v562, %v561
      %v642 = vpack.c.b16 %v564, %v563
      %v643 = vpack.c.b16 %v566, %v565
      %v644 = vpack.c.b16 %v568, %v567
      %v645 = vpack.c.b16 %v570, %v569
      %v646 = vpack.c.b16 %v572, %v571
      %v647 = vpack.c.b16 %v574, %v573
      %v648 = vpack.c.b16 %v576, %v575
      %v649 = vpack.c.b16 %v578, %v577
      %v650 = vpack.c.b16 %v580, %v579
      %v651 = vpack.c.b16 %v582, %v581
      %v652 = vpack.c.b16 %v584, %v583
      %v653 = vpack.c.b16 %v586, %v585
      %v654 = vpack.c.b16 %v588, %v587
      %v655 = vpack.c.b16 %v590, %v589
      %v656 = vpack.c.b16 %v592, %v591
      %721 = vmatprep.subr.bf16.mxu0 0
      %722 = vmatpush1.bf16.msra.mxu0 %v600
      %723 = vmatprep.subr.bf16.mxu0 0
      %724 = vmatpush1.bf16.msra.mxu0 %v599
      %725 = vmatprep.subr.bf16.mxu0 0
      %726 = vmatpush1.bf16.msra.mxu0 %v598
      %727 = vmatprep.subr.bf16.mxu0 0
      %728 = vmatpush1.bf16.msra.mxu0 %v597
      %729 = vmatprep.subr.bf16.mxu0 0
      %730 = vmatpush1.bf16.msra.mxu0 %v596
      %731 = vmatprep.subr.bf16.mxu0 0
      %732 = vmatpush1.bf16.msra.mxu0 %v595
      %733 = vmatprep.subr.bf16.mxu0 0
      %734 = vmatpush1.bf16.msra.mxu0 %v594
      %735 = vmatprep.subr.bf16.mxu0 0
      %736 = vmatpush1.bf16.msra.mxu0 %v593
      %737 = vmatprep.subr.bf16.mxu0 0
      %738 = vmatpush2.bf16.msra.mxu0 %v608
      %739 = vmatprep.subr.bf16.mxu0 0
      %740 = vmatpush2.bf16.msra.mxu0 %v607
      %741 = vmatprep.subr.bf16.mxu0 0
      %742 = vmatpush2.bf16.msra.mxu0 %v606
      %743 = vmatprep.subr.bf16.mxu0 0
      %744 = vmatpush2.bf16.msra.mxu0 %v605
      %745 = vmatprep.subr.bf16.mxu0 0
      %746 = vmatpush2.bf16.msra.mxu0 %v604
      %747 = vmatprep.subr.bf16.mxu0 0
      %748 = vmatpush2.bf16.msra.mxu0 %v603
      %749 = vmatprep.subr.bf16.mxu0 0
      %750 = vmatpush2.bf16.msra.mxu0 %v602
      %751 = vmatprep.subr.bf16.mxu0 0
      %752 = vmatpush2.bf16.msra.mxu0 %v601
      %753 = vmatprep.mubr.bf16.mxu0 %v322
      %754 = vmatmul.mubr.bf16.gmra.mxu0 %v321
      %v755 = vpop.f32.mrf.mxu0
      %v756 = vadd.f32 %v307, %v755
      %v757 = vpop.f32.mrf.mxu0
      %v758 = vpop.f32.mrf.mxu0
      %v759 = vpop.f32.mrf.mxu0
      %760 = vdwg.mxu0
      %761 = vmatprep.subr.bf16.mxu0 0
      %762 = vmatpush1.bf16.msra.mxu0 %v616
      %763 = vmatprep.subr.bf16.mxu0 0
      %764 = vmatpush1.bf16.msra.mxu0 %v615
      %765 = vmatprep.subr.bf16.mxu0 0
      %766 = vmatpush1.bf16.msra.mxu0 %v614
      %767 = vmatprep.subr.bf16.mxu0 0
      %768 = vmatpush1.bf16.msra.mxu0 %v613
      %769 = vmatprep.subr.bf16.mxu0 0
      %770 = vmatpush1.bf16.msra.mxu0 %v612
      %771 = vmatprep.subr.bf16.mxu0 0
      %772 = vmatpush1.bf16.msra.mxu0 %v611
      %773 = vmatprep.subr.bf16.mxu0 0
      %774 = vmatpush1.bf16.msra.mxu0 %v610
      %775 = vmatprep.subr.bf16.mxu0 0
      %776 = vmatpush1.bf16.msra.mxu0 %v609
      %777 = vmatprep.subr.bf16.mxu0 0
      %778 = vmatpush2.bf16.msra.mxu0 %v624
      %779 = vmatprep.subr.bf16.mxu0 0
      %780 = vmatpush2.bf16.msra.mxu0 %v623
      %781 = vmatprep.subr.bf16.mxu0 0
      %782 = vmatpush2.bf16.msra.mxu0 %v622
      %783 = vmatprep.subr.bf16.mxu0 0
      %784 = vmatpush2.bf16.msra.mxu0 %v621
      %785 = vmatprep.subr.bf16.mxu0 0
      %786 = vmatpush2.bf16.msra.mxu0 %v620
      %787 = vmatprep.subr.bf16.mxu0 0
      %788 = vmatpush2.bf16.msra.mxu0 %v619
      %789 = vmatprep.subr.bf16.mxu0 0
      %790 = vmatpush2.bf16.msra.mxu0 %v618
      %791 = vmatprep.subr.bf16.mxu0 0
      %792 = vmatpush2.bf16.msra.mxu0 %v617
      %793 = vmatprep.mubr.bf16.mxu0 %v324
      %794 = vmatmul.mubr.bf16.gmra.mxu0 %v323
      %v795 = vpop.f32.mrf.mxu0
      %v796 = vadd.f32 %v756, %v795
      %v797 = vpop.f32.mrf.mxu0
      %v798 = vpop.f32.mrf.mxu0
      %v799 = vpop.f32.mrf.mxu0
      %800 = vdwg.mxu0
      %801 = vmatprep.subr.bf16.mxu0 0
      %802 = vmatpush1.bf16.msra.mxu0 %v632
      %803 = vmatprep.subr.bf16.mxu0 0
      %804 = vmatpush1.bf16.msra.mxu0 %v631
      %805 = vmatprep.subr.bf16.mxu0 0
      %806 = vmatpush1.bf16.msra.mxu0 %v630
      %807 = vmatprep.subr.bf16.mxu0 0
      %808 = vmatpush1.bf16.msra.mxu0 %v629
      %809 = vmatprep.subr.bf16.mxu0 0
      %810 = vmatpush1.bf16.msra.mxu0 %v628
      %811 = vmatprep.subr.bf16.mxu0 0
      %812 = vmatpush1.bf16.msra.mxu0 %v627
      %813 = vmatprep.subr.bf16.mxu0 0
      %814 = vmatpush1.bf16.msra.mxu0 %v626
      %815 = vmatprep.subr.bf16.mxu0 0
      %816 = vmatpush1.bf16.msra.mxu0 %v625
      %817 = vmatprep.subr.bf16.mxu0 0
      %818 = vmatpush2.bf16.msra.mxu0 %v640
      %819 = vmatprep.subr.bf16.mxu0 0
      %820 = vmatpush2.bf16.msra.mxu0 %v639
      %821 = vmatprep.subr.bf16.mxu0 0
      %822 = vmatpush2.bf16.msra.mxu0 %v638
      %823 = vmatprep.subr.bf16.mxu0 0
      %824 = vmatpush2.bf16.msra.mxu0 %v637
      %825 = vmatprep.subr.bf16.mxu0 0
      %826 = vmatpush2.bf16.msra.mxu0 %v636
      %827 = vmatprep.subr.bf16.mxu0 0
      %828 = vmatpush2.bf16.msra.mxu0 %v635
      %829 = vmatprep.subr.bf16.mxu0 0
      %830 = vmatpush2.bf16.msra.mxu0 %v634
      %831 = vmatprep.subr.bf16.mxu0 0
      %832 = vmatpush2.bf16.msra.mxu0 %v633
      %833 = vmatprep.mubr.bf16.mxu0 %v326
      %834 = vmatmul.mubr.bf16.gmra.mxu0 %v325
      %v835 = vpop.f32.mrf.mxu0
      %v836 = vadd.f32 %v796, %v835
      %v837 = vpop.f32.mrf.mxu0
      %v838 = vpop.f32.mrf.mxu0
      %v839 = vpop.f32.mrf.mxu0
      %840 = vdwg.mxu0
      %841 = vmatprep.subr.bf16.mxu0 0
      %842 = vmatpush1.bf16.msra.mxu0 %v648
      %843 = vmatprep.subr.bf16.mxu0 0
      %844 = vmatpush1.bf16.msra.mxu0 %v647
      %845 = vmatprep.subr.bf16.mxu0 0
      %846 = vmatpush1.bf16.msra.mxu0 %v646
      %847 = vmatprep.subr.bf16.mxu0 0
      %848 = vmatpush1.bf16.msra.mxu0 %v645
      %849 = vmatprep.subr.bf16.mxu0 0
      %850 = vmatpush1.bf16.msra.mxu0 %v644
      %851 = vmatprep.subr.bf16.mxu0 0
      %852 = vmatpush1.bf16.msra.mxu0 %v643
      %853 = vmatprep.subr.bf16.mxu0 0
      %854 = vmatpush1.bf16.msra.mxu0 %v642
      %855 = vmatprep.subr.bf16.mxu0 0
      %856 = vmatpush1.bf16.msra.mxu0 %v641
      %857 = vmatprep.subr.bf16.mxu0 0
      %858 = vmatpush2.bf16.msra.mxu0 %v656
      %859 = vmatprep.subr.bf16.mxu0 0
      %860 = vmatpush2.bf16.msra.mxu0 %v655
      %861 = vmatprep.subr.bf16.mxu0 0
      %862 = vmatpush2.bf16.msra.mxu0 %v654
      %863 = vmatprep.subr.bf16.mxu0 0
      %864 = vmatpush2.bf16.msra.mxu0 %v653
      %865 = vmatprep.subr.bf16.mxu0 0
      %866 = vmatpush2.bf16.msra.mxu0 %v652
      %867 = vmatprep.subr.bf16.mxu0 0
      %868 = vmatpush2.bf16.msra.mxu0 %v651
      %869 = vmatprep.subr.bf16.mxu0 0
      %870 = vmatpush2.bf16.msra.mxu0 %v650
      %871 = vmatprep.subr.bf16.mxu0 0
      %872 = vmatpush2.bf16.msra.mxu0 %v649
      %873 = vmatprep.mubr.bf16.mxu0 %v328
      %874 = vmatmul.mubr.bf16.gmra.mxu0 %v327
      %v875 = vpop.f32.mrf.mxu0
      %v876 = vadd.f32 %v836, %v875
      %v877 = vpop.f32.mrf.mxu0
      %v878 = vpop.f32.mrf.mxu0
      %v879 = vpop.f32.mrf.mxu0
      %880 = vdwg.mxu0
      %v881 = vmax.f32 %v876, 0.0
      %v882 = vpack.c.bf16 %v881, %v881
      %883 = vst [vmem:[%s168] sm:$0xf] %v882
      %p884 = scmp.lt.s32.totalorder %s14, 3
      %s885 = scalar_select %p884, %s14, 3
      %s886 = smul.addr %s885, 4
      %s887 = scalar_lea.vmem %s3, %s886
      // Predicated region
      $region33: #{conv2d_bn_act.1} parent=31 // pred_check
        %p888 = pneg %p100
      $region34: #{conv2d_bn_act.1} parent=31 // pred_check_branch
        %890 = sbr.rel (%p888) target = $region36
      $region35: #{conv2d_bn_act.1} parent=31 // pred_region
        _
      $region36: #{conv2d_bn_act.1} parent=31 // pred_fallthru
        _
    $region32: #{conv2d_bn_act.1} parent=5 // pred_fallthru
      _
    %p891 = scmp.le.s32.totalorder 2, %s9
    // Predicated region
    $region37: #{conv2d_bn_act.1} parent=5 // pred_check
      %p892 = pneg %p891
    $region38: #{conv2d_bn_act.1} parent=5 // pred_check_branch
      %894 = sbr.rel (%p892) target = $region40
    $region39: #{conv2d_bn_act.1} parent=5 // pred_region
      %s895 = ssub.s32 %s9, 2
      // Predicated region
      $region41: #{conv2d_bn_act.1} parent=39 // pred_check
        %p896 = pneg %p106
      $region42: #{conv2d_bn_act.1} parent=39 // pred_check_branch
        %898 = sbr.rel (%p896) target = $region44
      $region43: #{conv2d_bn_act.1} parent=39 // pred_region
        %p899 = scmp.lt.s32.totalorder %s15, 3
        %s900 = scalar_select %p899, %s15, 3
        %s901 = smul.addr %s900, 4
        %s902 = scalar_lea.vmem %s3, %s901
      $region44: #{conv2d_bn_act.1} parent=39 // pred_fallthru
        _
    $region40: #{conv2d_bn_act.1} parent=5 // pred_fallthru
      _
  $region6: #{conv2d_bn_act.1} parent=0 // loop_footer
    %s13 = sadd.s32 1, %s9
  $region7: #{conv2d_bn_act.1} parent=0 // loop_footer_branch
    %8 = sbr.rel target = $region3
  $region8: #{conv2d_bn_act.1} parent=0 // loop_exit
    _

</llo_original>
